<compile_context>
chip_gen: v6e
topology: v6e:2x2x1
jax: 0.10.0
libtpu: 0.0.40
codegen_flags: <defaults>
</compile_context>

<pallas_src>
import jax
import jax.numpy as jnp
from jax.experimental import pallas as pl
from jax.experimental.pallas import tpu as pltpu


def _conv_bn_act_kernel(x_ref, w_ref, shift_ref, o_ref):
    # x_ref:     (1, H+2, W, 3*Cin)  bf16  kw-folded, halo-padded NHWC input (whole image)
    # w_ref:     (3, 3*Cin, CoutP)   bf16  per-kh weight slab, BN scale folded in
    # shift_ref: (1, CoutP)          f32   folded BN shift = beta + scale*(bias - mean)
    # o_ref:     (1, TH, W, CoutP)   f32   one row-strip of the output
    t = pl.program_id(1)
    th = o_ref.shape[1]
    w = o_ref.shape[2]
    coutp = o_ref.shape[3]
    k = x_ref.shape[3]            # 3 * Cin

    row0 = t * th                 # first padded input row needed by this strip
    acc = jnp.zeros((th * w, coutp), jnp.float32)
    for kh in range(3):           # statically unrolled; slice is on an outer dim
        slab = x_ref[0, pl.ds(row0 + kh, th), :, :].reshape(th * w, k)
        acc = acc + jnp.dot(slab, w_ref[kh], preferred_element_type=jnp.float32)

    y = jnp.maximum(acc + shift_ref[...], 0.0)            # shift + ReLU epilogue
    o_ref[...] = y.reshape(1, th, w, coutp).astype(o_ref.dtype)


def _pick_row_tile(h):
    # Prefer >= 2 row strips so DMA/compute pipelining and 2-TC sharding have
    # work per step; fall back to the full image for tiny H.
    for th in (64, 32, 16, 8):
        if h % th == 0 and h // th >= 2:
            return th
    return h


@jax.jit
def conv_bn_act(x_nchw, w_oihw, conv_bias, gamma, beta, run_mean, run_var,
                eps=1e-5):
    """ConvBNAct forward (eval-mode BN). x_nchw: (N, Cin, H, W) -> (N, Cout, H, W)."""
    n, cin, h, w = x_nchw.shape
    cout = w_oihw.shape[0]
    cout_p = ((cout + 127) // 128) * 128          # lane-dense output channels
    th = _pick_row_tile(h)

    # ---- wrapper-side layout prep (plain XLA glue) ----
    # TODO(synk): for a full NHWC pipeline the NCHW<->NHWC transposes and the
    # halo pad could move into the kernel / be elided; kept here so the public
    # API matches the PyTorch NCHW module.
    x_nhwc = jnp.transpose(x_nchw, (0, 2, 3, 1)).astype(jnp.bfloat16)
    x_pad = jnp.pad(x_nhwc, ((0, 0), (1, 1), (1, 1), (0, 0)))          # padding=1
    # Fold the 3 kw taps into the channel axis: (N, H+2, W, 3*Cin),
    # channel index = kw*Cin + c.
    x_kw = jnp.concatenate(
        [x_pad[:, :, kw:kw + w, :] for kw in range(3)], axis=-1)

    # BN folding (f32): scale folded into the weights, shift kept for epilogue.
    scale = gamma / jnp.sqrt(run_var + eps)                            # (Cout,)
    shift = beta + scale * (conv_bias - run_mean)                      # (Cout,)

    # (Cout, Cin, 3, 3) -> (kh, kw, Cin, Cout), scale-folded -> (3, 3*Cin, CoutP)
    w_t = jnp.transpose(w_oihw, (2, 3, 1, 0)).astype(jnp.float32) * scale
    w_folded = w_t.reshape(3, 3 * cin, cout)
    w_folded = jnp.pad(w_folded, ((0, 0), (0, 0), (0, cout_p - cout)))
    w_folded = w_folded.astype(jnp.bfloat16)

    shift_p = jnp.pad(shift.astype(jnp.float32),
                      (0, cout_p - cout)).reshape(1, cout_p)

    # ---- Pallas hot path: grid over (batch, row strips) ----
    out_p = pl.pallas_call(
        _conv_bn_act_kernel,
        out_shape=jax.ShapeDtypeStruct((n, h, w, cout_p), jnp.float32),
        grid_spec=pltpu.PrefetchScalarGridSpec(
            num_scalar_prefetch=0,
            grid=(n, h // th),
            in_specs=[
                # Whole kw-folded padded image per batch element: block index is
                # constant along the row-strip axis -> DMA'd once per batch.
                pl.BlockSpec((1, h + 2, w, 3 * cin), lambda b, t: (b, 0, 0, 0)),
                pl.BlockSpec((3, 3 * cin, cout_p), lambda b, t: (0, 0, 0)),
                pl.BlockSpec((1, cout_p), lambda b, t: (0, 0)),
            ],
            out_specs=pl.BlockSpec((1, th, w, cout_p),
                                   lambda b, t: (b, t, 0, 0)),
        ),
        compiler_params=pltpu.CompilerParams(
            dimension_semantics=("parallel", "parallel"),
            vmem_limit_bytes=32 * 1024 * 1024),
    )(x_kw, w_folded, shift_p)

    out = out_p[..., :cout]                        # drop padded (zero) lanes
    return jnp.transpose(out, (0, 3, 1, 2))        # back to NCHW


def _reference(x_nchw, w_oihw, conv_bias, gamma, beta, run_mean, run_var,
               eps=1e-5):
    """Pure-JAX f32 reference (lax conv, eval-mode BN, ReLU)."""
    y = jax.lax.conv_general_dilated(
        x_nchw.astype(jnp.float32), w_oihw.astype(jnp.float32),
        window_strides=(1, 1), padding=((1, 1), (1, 1)),
        dimension_numbers=("NCHW", "OIHW", "NCHW"))
    y = y + conv_bias[None, :, None, None]
    y = (y - run_mean[None, :, None, None]) / jnp.sqrt(
        run_var[None, :, None, None] + eps)
    y = y * gamma[None, :, None, None] + beta[None, :, None, None]
    return jnp.maximum(y, 0.0)


if __name__ == "__main__":
    # Small shapes consistent with the module: batch=2, in=4, out=8, 16x16.
    N, CIN, COUT, H, W = 2, 4, 8, 16, 16

    key = jax.random.PRNGKey(0)
    kx, kw, kb, kg, kbeta, km, kv = jax.random.split(key, 7)

    x = jax.random.normal(kx, (N, CIN, H, W), dtype=jnp.float32)

    # Deterministic synthetic parameters (shapes from nn.Conv2d / nn.BatchNorm2d).
    w = jax.random.normal(kw, (COUT, CIN, 3, 3), dtype=jnp.float32) * 0.1
    conv_bias = jax.random.normal(kb, (COUT,), dtype=jnp.float32) * 0.1
    gamma = 1.0 + 0.1 * jax.random.normal(kg, (COUT,), dtype=jnp.float32)
    beta = 0.1 * jax.random.normal(kbeta, (COUT,), dtype=jnp.float32)
    run_mean = 0.1 * jax.random.normal(km, (COUT,), dtype=jnp.float32)
    run_var = jnp.abs(1.0 + 0.1 * jax.random.normal(kv, (COUT,),
                                                    dtype=jnp.float32))

    out = conv_bn_act(x, w, conv_bias, gamma, beta, run_mean, run_var)
    out = jax.block_until_ready(out)

    ref = _reference(x, w, conv_bias, gamma, beta, run_mean, run_var)
    assert out.shape == (N, COUT, H, W)
    # bf16 matmul inputs (per perf review) -> tolerance reflects bf16 rounding.
    assert jnp.allclose(out, ref, atol=2e-2, rtol=2e-2), (
        float(jnp.max(jnp.abs(out - ref))))

    print("KERNEL_OK")
</pallas_src>

<mosaic_0001>
module attributes {stable_mosaic.version = 11 : i64} {
  func.func @_conv_bn_act_kernel(%arg0: i32, %arg1: i32, %arg2: memref<1x18x16x12xbf16, #tpu.memory_space<vmem>>, %arg3: memref<3x12x128xbf16, #tpu.memory_space<vmem>>, %arg4: memref<1x128xf32, #tpu.memory_space<vmem>>, %arg5: memref<1x8x16x128xf32, #tpu.memory_space<vmem>>) attributes {dimension_semantics = [#tpu.dimension_semantics<parallel>, #tpu.dimension_semantics<parallel>], iteration_bounds = array<i64: 2, 2>, scalar_prefetch = 0 : i64, scratch_operands = 0 : i64, tpu.core_type = #tpu.core_type<tc>, window_params = [{transform_indices = @transform_0, window_bounds = array<i64: 1, 18, 16, 12>}, {pipeline_mode = #tpu.pipeline_mode<synchronous>, transform_indices = @transform_1, window_bounds = array<i64: 3, 12, 128>}, {pipeline_mode = #tpu.pipeline_mode<synchronous>, transform_indices = @transform_2, window_bounds = array<i64: 1, 128>}, {transform_indices = @transform_3, window_bounds = array<i64: 1, 8, 16, 128>}]} {
    %c8_i32 = arith.constant 8 : i32
    %0 = arith.muli %arg1, %c8_i32 : i32
    %cst = arith.constant 0.000000e+00 : f32
    %1 = vector.broadcast %cst : f32 to vector<128x128xf32>
    %c0_i32 = arith.constant 0 : i32
    %2 = arith.addi %0, %c0_i32 : i32
    %c0 = arith.constant 0 : index
    %3 = arith.index_cast %2 : i32 to index
    %c0_0 = arith.constant 0 : index
    %c0_1 = arith.constant 0 : index
    %4 = vector.load %arg2[%c0, %3, %c0_0, %c0_1] : memref<1x18x16x12xbf16, #tpu.memory_space<vmem>>, vector<1x8x16x12xbf16>
    %5 = vector.shape_cast %4 : vector<1x8x16x12xbf16> to vector<8x16x12xbf16>
    %6 = vector.shape_cast %5 : vector<8x16x12xbf16> to vector<128x12xbf16>
    %c0_2 = arith.constant 0 : index
    %c0_3 = arith.constant 0 : index
    %c0_4 = arith.constant 0 : index
    %7 = vector.load %arg3[%c0_2, %c0_3, %c0_4] : memref<3x12x128xbf16, #tpu.memory_space<vmem>>, vector<1x12x128xbf16>
    %8 = vector.shape_cast %7 : vector<1x12x128xbf16> to vector<12x128xbf16>
    %cst_5 = arith.constant dense<0.000000e+00> : vector<128x128xf32>
    %9 = tpu.matmul %6, %8, %cst_5 {dimension_numbers = #tpu.dot_dimension_numbers<[1], [0], [0], [1], [0, 0, 1, 1], [], []>} : vector<128x12xbf16>, vector<12x128xbf16>, vector<128x128xf32> -> vector<128x128xf32>
    %10 = arith.addf %1, %9 : vector<128x128xf32>
    %c1_i32 = arith.constant 1 : i32
    %11 = arith.addi %0, %c1_i32 : i32
    %c0_6 = arith.constant 0 : index
    %12 = arith.index_cast %11 : i32 to index
    %c0_7 = arith.constant 0 : index
    %c0_8 = arith.constant 0 : index
    %13 = vector.load %arg2[%c0_6, %12, %c0_7, %c0_8] : memref<1x18x16x12xbf16, #tpu.memory_space<vmem>>, vector<1x8x16x12xbf16>
    %14 = vector.shape_cast %13 : vector<1x8x16x12xbf16> to vector<8x16x12xbf16>
    %15 = vector.shape_cast %14 : vector<8x16x12xbf16> to vector<128x12xbf16>
    %c1 = arith.constant 1 : index
    %c0_9 = arith.constant 0 : index
    %c0_10 = arith.constant 0 : index
    %16 = vector.load %arg3[%c1, %c0_9, %c0_10] : memref<3x12x128xbf16, #tpu.memory_space<vmem>>, vector<1x12x128xbf16>
    %17 = vector.shape_cast %16 : vector<1x12x128xbf16> to vector<12x128xbf16>
    %cst_11 = arith.constant dense<0.000000e+00> : vector<128x128xf32>
    %18 = tpu.matmul %15, %17, %cst_11 {dimension_numbers = #tpu.dot_dimension_numbers<[1], [0], [0], [1], [0, 0, 1, 1], [], []>} : vector<128x12xbf16>, vector<12x128xbf16>, vector<128x128xf32> -> vector<128x128xf32>
    %19 = arith.addf %10, %18 : vector<128x128xf32>
    %c2_i32 = arith.constant 2 : i32
    %20 = arith.addi %0, %c2_i32 : i32
    %c0_12 = arith.constant 0 : index
    %21 = arith.index_cast %20 : i32 to index
    %c0_13 = arith.constant 0 : index
    %c0_14 = arith.constant 0 : index
    %22 = vector.load %arg2[%c0_12, %21, %c0_13, %c0_14] : memref<1x18x16x12xbf16, #tpu.memory_space<vmem>>, vector<1x8x16x12xbf16>
    %23 = vector.shape_cast %22 : vector<1x8x16x12xbf16> to vector<8x16x12xbf16>
    %24 = vector.shape_cast %23 : vector<8x16x12xbf16> to vector<128x12xbf16>
    %c2 = arith.constant 2 : index
    %c0_15 = arith.constant 0 : index
    %c0_16 = arith.constant 0 : index
    %25 = vector.load %arg3[%c2, %c0_15, %c0_16] : memref<3x12x128xbf16, #tpu.memory_space<vmem>>, vector<1x12x128xbf16>
    %26 = vector.shape_cast %25 : vector<1x12x128xbf16> to vector<12x128xbf16>
    %cst_17 = arith.constant dense<0.000000e+00> : vector<128x128xf32>
    %27 = tpu.matmul %24, %26, %cst_17 {dimension_numbers = #tpu.dot_dimension_numbers<[1], [0], [0], [1], [0, 0, 1, 1], [], []>} : vector<128x12xbf16>, vector<12x128xbf16>, vector<128x128xf32> -> vector<128x128xf32>
    %28 = arith.addf %19, %27 : vector<128x128xf32>
    %c0_18 = arith.constant 0 : index
    %c0_19 = arith.constant 0 : index
    %29 = vector.load %arg4[%c0_18, %c0_19] : memref<1x128xf32, #tpu.memory_space<vmem>>, vector<1x128xf32>
    %30 = vector.broadcast %29 : vector<1x128xf32> to vector<128x128xf32>
    %31 = arith.addf %28, %30 : vector<128x128xf32>
    %cst_20 = arith.constant 0.000000e+00 : f32
    %32 = vector.broadcast %cst_20 : f32 to vector<128x128xf32>
    %33 = arith.maximumf %31, %32 : vector<128x128xf32>
    %34 = vector.shape_cast %33 : vector<128x128xf32> to vector<1x8x16x128xf32>
    %c0_21 = arith.constant 0 : index
    %c0_22 = arith.constant 0 : index
    %c0_23 = arith.constant 0 : index
    %c0_24 = arith.constant 0 : index
    %35 = vector.load %arg5[%c0_21, %c0_22, %c0_23, %c0_24] : memref<1x8x16x128xf32, #tpu.memory_space<vmem>>, vector<1x8x16x128xf32>
    tpu.vector_store %arg5[%c0_21, %c0_22, %c0_23, %c0_24], %34 {strides = array<i32>} : memref<1x8x16x128xf32, #tpu.memory_space<vmem>>, vector<1x8x16x128xf32>,
    return
  }
  func.func @transform_0(%arg0: i32, %arg1: i32) -> (i32, i32, i32, i32) {
    %c0_i32 = arith.constant 0 : i32
    %c0_i32_0 = arith.constant 0 : i32
    %c0_i32_1 = arith.constant 0 : i32
    %c0_i32_2 = arith.constant 0 : i32
    return %arg0, %c0_i32, %c0_i32_0, %c0_i32_1 : i32, i32, i32, i32
  }
  func.func @transform_1(%arg0: i32, %arg1: i32) -> (i32, i32, i32) {
    %c0_i32 = arith.constant 0 : i32
    %c0_i32_0 = arith.constant 0 : i32
    %c0_i32_1 = arith.constant 0 : i32
    %c0_i32_2 = arith.constant 0 : i32
    return %c0_i32, %c0_i32_0, %c0_i32_1 : i32, i32, i32
  }
  func.func @transform_2(%arg0: i32, %arg1: i32) -> (i32, i32) {
    %c0_i32 = arith.constant 0 : i32
    %c0_i32_0 = arith.constant 0 : i32
    %c0_i32_1 = arith.constant 0 : i32
    return %c0_i32, %c0_i32_0 : i32, i32
  }
  func.func @transform_3(%arg0: i32, %arg1: i32) -> (i32, i32, i32, i32) {
    %c0_i32 = arith.constant 0 : i32
    %c0_i32_0 = arith.constant 0 : i32
    %c0_i32_1 = arith.constant 0 : i32
    return %arg0, %arg1, %c0_i32, %c0_i32_0 : i32, i32, i32, i32
  }
}

</mosaic_0001>

<llo_original>
// kernel: conv_bn_act.1
$region0: #{conv_bn_act.1}
  #allocation0 [shape = 'u32[]', space=smem, size = 0x4, offset = 0x4, fixed_abs, tag = 'smem constant byte address 0x4 - core index']
  #allocation1 [shape = 'u32[144,128]{1,0:T(1,128)}', space=vmem, size = 0x12000, scoped, tag = 'internal scratch']
  %s0 = inlined_call_operand.vmem [shape: bf16[2,18,16,12], index: 0, kind: input, shape index: {}]
  %s1 = inlined_call_operand.vmem [shape: bf16[3,12,128], index: 1, kind: input, shape index: {}]
  %s2 = inlined_call_operand.vmem [shape: f32[1,128], index: 2, kind: input, shape index: {}]
  %s3 = inlined_call_operand.vmem [shape: f32[2,16,16,128], index: 3, kind: output, shape index: {}]
  %s4 = sld [smem:[#allocation0]]
  $region45: #{conv_bn_act.1} parent=0
    _
  %s6 = ssub.s32 1, %s4
  %s7 = scalar_select 0, %s6, %s4
  loop: start=0, step=1, limit=6
  $region2: #{conv_bn_act.1} parent=0 // loop_pre_header
    _
  $region3: #{conv_bn_act.1} parent=0 // loop_header
    %s9 = sphi 0, %s13
    %p10 = scmp.ge.s32.totalorder %s9, 6
    %s16 = sphi 0, %s28
    %s17 = sphi 0, %s24
    %s18 = sphi 0, %s16
    %s19 = sphi 0, %s17
    %s20 = sphi 0, %s18
    %s21 = sphi 0, %s19
    %s31 = sphi 0, %s33
    %s34 = sphi 0, %s31
    %s35 = sphi 0, %s34
    %s51 = sphi 0, %s35
    %s55 = sphi 0, %s55
    %s57 = sphi 0, %s55
    %s58 = sphi 0, %s57
    %s72 = sphi 0, %s58
    %s76 = sphi 0, %s76
    %s78 = sphi 0, %s76
    %s79 = sphi 0, %s78
    %s93 = sphi 0, %s79
    %s101 = sphi 0, %s103
    %s104 = sphi 0, %s101
    %s105 = sphi 0, %s104
    %s121 = sphi 0, %s105
  $region4: #{conv_bn_act.1} parent=0 // loop_header_branch
    %12 = sbr.rel (%p10) target = $region8
  $region5: #{conv_bn_act.1} parent=0 // loop_body
    %s14 = ssub.s32 %s9, 1
    %s15 = ssub.s32 %s9, 2
    %s22 = sadd.s32 1, %s17
    %p23 = scmp.ge.s32.totalorder %s22, 2
    %s24 = scalar_select %p23, 0, %s22
    %s25 = sadd.s32 1, %s16
    %s26 = scalar_select %p23, %s25, %s16
    %p27 = scmp.ge.s32.totalorder %s26, 2
    %s28 = scalar_select %p27, 0, %s26
    %s29 = ssub.s32 %s16, %s28
    %p30 = scmp.eq.s32.totalorder %s29, 0
    %s32 = sadd.s32 %s31, 1
    %s33 = scalar_select %p30, %s31, %s32
    %p36 = pneg %p30
    %p37 = scmp.eq.s32.totalorder %s9, 3
    %p38 = por %p36, %p37
    %p39 = scmp.ne.s32.totalorder %s31, %s34
    %p40 = scmp.eq.s32.totalorder %s9, 0
    %p41 = por %p39, %p40
    %p42 = scmp.ne.s32.totalorder %s31, %s34
    %p43 = scmp.eq.s32.totalorder %s14, 3
    %p44 = por %p42, %p43
    %p45 = scmp.ne.s32.totalorder %s34, %s35
    %p46 = scmp.eq.s32.totalorder %s14, 0
    %p47 = por %p45, %p46
    %p48 = scmp.ne.s32.totalorder %s34, %s35
    %p49 = scmp.eq.s32.totalorder %s15, 3
    %p50 = por %p48, %p49
    %p52 = scmp.ne.s32.totalorder %s35, %s51
    %p53 = scmp.eq.s32.totalorder %s15, 0
    %p54 = por %p52, %p53
    %s56 = sadd.s32 %s55, 1
    %p59 = scmp.eq.s32.totalorder %s9, 3
    %p60 = scmp.ne.s32.totalorder %s55, %s57
    %p61 = scmp.eq.s32.totalorder %s9, 0
    %p62 = por %p60, %p61
    %p63 = scmp.ne.s32.totalorder %s55, %s57
    %p64 = scmp.eq.s32.totalorder %s14, 3
    %p65 = por %p63, %p64
    %p66 = scmp.ne.s32.totalorder %s57, %s58
    %p67 = scmp.eq.s32.totalorder %s14, 0
    %p68 = por %p66, %p67
    %p69 = scmp.ne.s32.totalorder %s57, %s58
    %p70 = scmp.eq.s32.totalorder %s15, 3
    %p71 = por %p69, %p70
    %p73 = scmp.ne.s32.totalorder %s58, %s72
    %p74 = scmp.eq.s32.totalorder %s15, 0
    %p75 = por %p73, %p74
    %s77 = sadd.s32 %s76, 1
    %p80 = scmp.eq.s32.totalorder %s9, 3
    %p81 = scmp.ne.s32.totalorder %s76, %s78
    %p82 = scmp.eq.s32.totalorder %s9, 0
    %p83 = por %p81, %p82
    %p84 = scmp.ne.s32.totalorder %s76, %s78
    %p85 = scmp.eq.s32.totalorder %s14, 3
    %p86 = por %p84, %p85
    %p87 = scmp.ne.s32.totalorder %s78, %s79
    %p88 = scmp.eq.s32.totalorder %s14, 0
    %p89 = por %p87, %p88
    %p90 = scmp.ne.s32.totalorder %s78, %s79
    %p91 = scmp.eq.s32.totalorder %s15, 3
    %p92 = por %p90, %p91
    %p94 = scmp.ne.s32.totalorder %s79, %s93
    %p95 = scmp.eq.s32.totalorder %s15, 0
    %p96 = por %p94, %p95
    %s97 = ssub.s32 %s16, %s28
    %s98 = ssub.s32 %s17, %s24
    %s99 = sor.u32 %s97, %s98
    %p100 = scmp.eq.s32.totalorder %s99, 0
    %s102 = sadd.s32 %s101, 1
    %s103 = scalar_select %p100, %s101, %s102
    %p106 = pneg %p100
    %p107 = scmp.eq.s32.totalorder %s9, 3
    %p108 = por %p106, %p107
    %p109 = scmp.ne.s32.totalorder %s101, %s104
    %p110 = scmp.eq.s32.totalorder %s9, 0
    %p111 = por %p109, %p110
    %p112 = scmp.ne.s32.totalorder %s101, %s104
    %p113 = scmp.eq.s32.totalorder %s14, 3
    %p114 = por %p112, %p113
    %p115 = scmp.ne.s32.totalorder %s104, %s105
    %p116 = scmp.eq.s32.totalorder %s14, 0
    %p117 = por %p115, %p116
    %p118 = scmp.ne.s32.totalorder %s104, %s105
    %p119 = scmp.eq.s32.totalorder %s15, 3
    %p120 = por %p118, %p119
    %p122 = scmp.ne.s32.totalorder %s105, %s121
    %p123 = scmp.eq.s32.totalorder %s15, 0
    %p124 = por %p122, %p123
    %p125 = scmp.le.s32.totalorder 1, %s9
    %p126 = scmp.lt.s32.totalorder %s9, 5
    %p127 = pnand %p125, %p126
    %p128 = pneg %p127
    // Predicated region
    $region9: #{conv_bn_act.1} parent=5 // pred_check
      _
    $region10: #{conv_bn_act.1} parent=5 // pred_check_branch
      %130 = sbr.rel (%p127) target = $region12
    $region11: #{conv_bn_act.1} parent=5 // pred_region
      %s131 = ssub.s32 %s9, 1
      // Predicated region
      $region13: #{conv_bn_act.1} parent=11 // pred_check
        %p132 = pneg %p68
      $region14: #{conv_bn_act.1} parent=11 // pred_check_branch
        %134 = sbr.rel (%p132) target = $region16
      $region15: #{conv_bn_act.1} parent=11 // pred_region
        _
      $region16: #{conv_bn_act.1} parent=11 // pred_fallthru
        _
      // Predicated region
      $region17: #{conv_bn_act.1} parent=11 // pred_check
        %p135 = pneg %p89
      $region18: #{conv_bn_act.1} parent=11 // pred_check_branch
        %137 = sbr.rel (%p135) target = $region20
      $region19: #{conv_bn_act.1} parent=11 // pred_region
        _
      $region20: #{conv_bn_act.1} parent=11 // pred_fallthru
        _
    $region12: #{conv_bn_act.1} parent=5 // pred_fallthru
      _
    %p138 = scmp.lt.s32.totalorder %s9, 4
    // Predicated region
    $region21: #{conv_bn_act.1} parent=5 // pred_check
      %p139 = pneg %p138
    $region22: #{conv_bn_act.1} parent=5 // pred_check_branch
      %141 = sbr.rel (%p139) target = $region24
    $region23: #{conv_bn_act.1} parent=5 // pred_region
      // Predicated region
      $region25: #{conv_bn_act.1} parent=23 // pred_check
        %p142 = pneg %p41
      $region26: #{conv_bn_act.1} parent=23 // pred_check_branch
        %144 = sbr.rel (%p142) target = $region28
      $region27: #{conv_bn_act.1} parent=23 // pred_region
        %p145 = scmp.lt.s32.totalorder %s16, 1
        %s146 = scalar_select %p145, %s16, 1
        %s147 = smul.addr %s146, 36
        %s148 = smul.addr %s147, 4
        %s149 = scalar_lea.vmem %s0, %s148
      $region28: #{conv_bn_act.1} parent=23 // pred_fallthru
        _
    $region24: #{conv_bn_act.1} parent=5 // pred_fallthru
      _
    %p150 = scmp.le.s32.totalorder 1, %s9
    %p151 = scmp.lt.s32.totalorder %s9, 5
    %p152 = pnand %p150, %p151
    %p153 = pneg %p152
    // Predicated region
    $region29: #{conv_bn_act.1} parent=5 // pred_check
      _
    $region30: #{conv_bn_act.1} parent=5 // pred_check_branch
      %155 = sbr.rel (%p152) target = $region32
    $region31: #{conv_bn_act.1} parent=5 // pred_region
      %s156 = ssub.s32 %s9, 1
      %p157 = scmp.lt.s32.totalorder %s18, 1
      %s158 = scalar_select %p157, %s18, 1
      %s159 = smul.addr %s158, 36
      %s160 = smul.addr %s159, 4
      %s161 = scalar_lea.vmem %s0, %s160
      %p162 = pneg %p47
      %p163 = pneg %p44
      %p164 = pneg %p68
      %p165 = pneg %p65
      %p166 = pneg %p89
      %p167 = pneg %p86
      %p168 = pneg %p117
      %p169 = pneg %p114
      %s170 = smul.u32 8, %s19
      %p171 = scmp.lt.s32.totalorder %s18, 1
      %s172 = scalar_select %p171, %s18, 1
      %p173 = scmp.lt.s32.totalorder %s170, 15
      %s174 = scalar_select %p173, %s170, 15
      %s175 = smul.addr %s174, 2
      %s176 = smul.addr %s172, 32
      %s177 = sadd.s32 %s175, %s176
      %s178 = smul.addr %s177, 8
      %s179 = scalar_lea.vmem %s3, %s178
      %p180 = scmp.lt.s32.totalorder %s18, 1
      %s181 = scalar_select %p180, %s18, 1
      %s182 = smul.addr %s181, 36
      %s183 = smul.addr %s182, 4
      %s184 = scalar_lea.vmem %s0, %s183
      %s185 = smul.u32 8, %s19
      %p186 = scmp.lt.s32.totalorder %s18, 1
      %s187 = scalar_select %p186, %s18, 1
      %p188 = scmp.lt.s32.totalorder %s185, 15
      %s189 = scalar_select %p188, %s185, 15
      %s190 = smul.addr %s189, 2
      %s191 = smul.addr %s187, 32
      %s192 = sadd.s32 %s190, %s191
      %s193 = smul.addr %s192, 8
      %s194 = scalar_lea.vmem %s3, %s193
      %s195 = smul.u32 8, %s19
      %s197 = smul.u32 %s19, 8
      %s198 = smul.u32 %s197, 2
      %s199 = smul.addr %s198, 4
      %s200 = scalar_lea.vmem %s184, %s199
      %v201 = vld [vmem:[%s200] sm:$0xf]
      %v202 = vld [vmem:[%s200 + $0x4] sm:$0xf]
      %v203 = vld [vmem:[%s200 + $0x8] sm:$0xf]
      %v204 = vld [vmem:[%s200 + $0xc] sm:$0xf]
      %v205 = vld [vmem:[%s200 + $0x10] sm:$0xf]
      %v206 = vld [vmem:[%s200 + $0x14] sm:$0xf]
      %v207 = vld [vmem:[%s200 + $0x18] sm:$0xf]
      %v208 = vld [vmem:[%s200 + $0x1c] sm:$0xf]
      %v209 = vld [vmem:[%s200 + $0x20] sm:$0xf]
      %v210 = vld [vmem:[%s200 + $0x24] sm:$0xf]
      %v211 = vld [vmem:[%s200 + $0x28] sm:$0xf]
      %v212 = vld [vmem:[%s200 + $0x2c] sm:$0xf]
      %v213 = vld [vmem:[%s200 + $0x30] sm:$0xf]
      %v214 = vld [vmem:[%s200 + $0x34] sm:$0xf]
      %v215 = vld [vmem:[%s200 + $0x38] sm:$0xf]
      %v216 = vld [vmem:[%s200 + $0x3c] sm:$0xf]
      %v217 = vld [vmem:[%s1] sm:$0xf]
      %v218 = vld [vmem:[%s1 + $0x4] sm:$0x3]
      %s219 = sadd.s32 %s197, 1
      %s220 = smul.u32 %s219, 2
      %s221 = smul.addr %s220, 4
      %s222 = scalar_lea.vmem %s184, %s221
      %v223 = vld [vmem:[%s222] sm:$0xf]
      %v224 = vld [vmem:[%s222 + $0x4] sm:$0xf]
      %v225 = vld [vmem:[%s222 + $0x8] sm:$0xf]
      %v226 = vld [vmem:[%s222 + $0xc] sm:$0xf]
      %v227 = vld [vmem:[%s222 + $0x10] sm:$0xf]
      %v228 = vld [vmem:[%s222 + $0x14] sm:$0xf]
      %v229 = vld [vmem:[%s222 + $0x18] sm:$0xf]
      %v230 = vld [vmem:[%s222 + $0x1c] sm:$0xf]
      %v231 = vld [vmem:[%s222 + $0x20] sm:$0xf]
      %v232 = vld [vmem:[%s222 + $0x24] sm:$0xf]
      %v233 = vld [vmem:[%s222 + $0x28] sm:$0xf]
      %v234 = vld [vmem:[%s222 + $0x2c] sm:$0xf]
      %v235 = vld [vmem:[%s222 + $0x30] sm:$0xf]
      %v236 = vld [vmem:[%s222 + $0x34] sm:$0xf]
      %v237 = vld [vmem:[%s222 + $0x38] sm:$0xf]
      %v238 = vld [vmem:[%s222 + $0x3c] sm:$0xf]
      %s239 = scalar_lea.vmem %s1, 8
      %v240 = vld [vmem:[%s239] sm:$0xf]
      %v241 = vld [vmem:[%s239 + $0x4] sm:$0x3]
      %v258 = vunpack.c.l.b16 %v223
      %v259 = vunpack.c.l.b16 %v224
      %v260 = vunpack.c.l.b16 %v225
      %v261 = vunpack.c.l.b16 %v226
      %v262 = vunpack.c.l.b16 %v227
      %v263 = vunpack.c.l.b16 %v228
      %v264 = vunpack.c.l.b16 %v229
      %v265 = vunpack.c.l.b16 %v230
      %v266 = vunpack.c.l.b16 %v231
      %v267 = vunpack.c.l.b16 %v232
      %v268 = vunpack.c.l.b16 %v233
      %v269 = vunpack.c.l.b16 %v234
      %v270 = vunpack.c.l.b16 %v235
      %v271 = vunpack.c.l.b16 %v236
      %v272 = vunpack.c.l.b16 %v237
      %v273 = vunpack.c.l.b16 %v238
      %v274 = vpack.c.b16 %v259, %v258
      %v275 = vpack.c.b16 %v261, %v260
      %v276 = vpack.c.b16 %v263, %v262
      %v277 = vpack.c.b16 %v265, %v264
      %v278 = vpack.c.b16 %v267, %v266
      %v279 = vpack.c.b16 %v269, %v268
      %v280 = vpack.c.b16 %v271, %v270
      %v281 = vpack.c.b16 %v273, %v272
      %v284 = vunpack.c.l.b16 %v240
      %v285 = vunpack.c.l.b16 %v241
      %v286 = vpack.c.b16 %v285, %v284
      %vm287 = vcmask 97280
      %v289 = vsel %vm287, %v274, 0
      %v292 = vsel %vm287, %v275, 0
      %v295 = vsel %vm287, %v276, 0
      %v298 = vsel %vm287, %v277, 0
      %v301 = vsel %vm287, %v278, 0
      %v304 = vsel %vm287, %v279, 0
      %v307 = vsel %vm287, %v280, 0
      %v310 = vsel %vm287, %v281, 0
      %vm312 = vcmask 1045504
      %v314 = vsel %vm312, %v286, 0
      %316 = vmatprep.subr.bf16.mxu0 0
      %317 = vmatpush1.bf16.msra.mxu0 0
      %318 = vmatprep.subr.bf16.mxu0 0
      %319 = vmatpush1.bf16.msra.mxu0 0
      %320 = vmatprep.subr.bf16.mxu0 0
      %321 = vmatpush1.bf16.msra.mxu0 0
      %322 = vmatprep.subr.bf16.mxu0 0
      %323 = vmatpush1.bf16.msra.mxu0 0
      %324 = vmatprep.subr.bf16.mxu0 0
      %325 = vmatpush1.bf16.msra.mxu0 0
      %326 = vmatprep.subr.bf16.mxu0 0
      %327 = vmatpush1.bf16.msra.mxu0 0
      %328 = vmatprep.subr.bf16.mxu0 0
      %329 = vmatpush1.bf16.msra.mxu0 0
      %330 = vmatprep.subr.bf16.mxu0 0
      %331 = vmatpush1.bf16.msra.mxu0 %v314
      %332 = vmatprep.subr.bf16.mxu0 0
      %333 = vmatpush2.bf16.msra.mxu0 0
      %334 = vmatprep.subr.bf16.mxu0 0
      %335 = vmatpush2.bf16.msra.mxu0 0
      %336 = vmatprep.subr.bf16.mxu0 0
      %337 = vmatpush2.bf16.msra.mxu0 0
      %338 = vmatprep.subr.bf16.mxu0 0
      %339 = vmatpush2.bf16.msra.mxu0 0
      %340 = vmatprep.subr.bf16.mxu0 0
      %341 = vmatpush2.bf16.msra.mxu0 0
      %342 = vmatprep.subr.bf16.mxu0 0
      %343 = vmatpush2.bf16.msra.mxu0 0
      %344 = vmatprep.subr.bf16.mxu0 0
      %345 = vmatpush2.bf16.msra.mxu0 0
      %346 = vmatprep.subr.bf16.mxu0 0
      %347 = vmatpush2.bf16.msra.mxu0 0
      %348 = vmatprep.mubr.bf16.mxu0 0
      %349 = vmatmul.mubr.bf16.gmra.mxu0 %v289
      %v350 = vpop.f32.mrf.mxu0
      %v351 = vadd.f32 0.0, %v350
      %v352 = vpop.f32.mrf.mxu0
      %v353 = vpop.f32.mrf.mxu0
      %v354 = vadd.f32 0.0, %v353
      %v355 = vpop.f32.mrf.mxu0
      %356 = vmatprep.mubr.bf16.mxu0 0
      %357 = vmatmul.mubr.bf16.gmra.mxu0 %v292
      %v358 = vpop.f32.mrf.mxu0
      %v359 = vadd.f32 0.0, %v358
      %v360 = vpop.f32.mrf.mxu0
      %v361 = vpop.f32.mrf.mxu0
      %v362 = vadd.f32 0.0, %v361
      %v363 = vpop.f32.mrf.mxu0
      %364 = vmatprep.mubr.bf16.mxu0 0
      %365 = vmatmul.mubr.bf16.gmra.mxu0 %v295
      %v366 = vpop.f32.mrf.mxu0
      %v367 = vadd.f32 0.0, %v366
      %v368 = vpop.f32.mrf.mxu0
      %v369 = vpop.f32.mrf.mxu0
      %v370 = vadd.f32 0.0, %v369
      %v371 = vpop.f32.mrf.mxu0
      %372 = vmatprep.mubr.bf16.mxu0 0
      %373 = vmatmul.mubr.bf16.gmra.mxu0 %v298
      %v374 = vpop.f32.mrf.mxu0
      %v375 = vadd.f32 0.0, %v374
      %v376 = vpop.f32.mrf.mxu0
      %v377 = vpop.f32.mrf.mxu0
      %v378 = vadd.f32 0.0, %v377
      %v379 = vpop.f32.mrf.mxu0
      %380 = vmatprep.mubr.bf16.mxu0 0
      %381 = vmatmul.mubr.bf16.gmra.mxu0 %v301
      %v382 = vpop.f32.mrf.mxu0
      %v383 = vadd.f32 0.0, %v382
      %v384 = vpop.f32.mrf.mxu0
      %v385 = vpop.f32.mrf.mxu0
      %v386 = vadd.f32 0.0, %v385
      %v387 = vpop.f32.mrf.mxu0
      %388 = vmatprep.mubr.bf16.mxu0 0
      %389 = vmatmul.mubr.bf16.gmra.mxu0 %v304
      %v390 = vpop.f32.mrf.mxu0
      %v391 = vadd.f32 0.0, %v390
      %v392 = vpop.f32.mrf.mxu0
      %v393 = vpop.f32.mrf.mxu0
      %v394 = vadd.f32 0.0, %v393
      %v395 = vpop.f32.mrf.mxu0
      %396 = vmatprep.mubr.bf16.mxu0 0
      %397 = vmatmul.mubr.bf16.gmra.mxu0 %v307
      %v398 = vpop.f32.mrf.mxu0
      %v399 = vadd.f32 0.0, %v398
      %v400 = vpop.f32.mrf.mxu0
      %v401 = vpop.f32.mrf.mxu0
      %v402 = vadd.f32 0.0, %v401
      %v403 = vpop.f32.mrf.mxu0
      %404 = vmatprep.mubr.bf16.mxu0 0
      %405 = vmatmul.mubr.bf16.gmra.mxu0 %v310
      %v406 = vpop.f32.mrf.mxu0
      %v407 = vadd.f32 0.0, %v406
      %v408 = vpop.f32.mrf.mxu0
      %v409 = vpop.f32.mrf.mxu0
      %v410 = vadd.f32 0.0, %v409
      %v411 = vpop.f32.mrf.mxu0
      %412 = vdwg.mxu0
      %v429 = vunpack.c.l.b16 %v201
      %v430 = vunpack.c.l.b16 %v202
      %v431 = vunpack.c.l.b16 %v203
      %v432 = vunpack.c.l.b16 %v204
      %v433 = vunpack.c.l.b16 %v205
      %v434 = vunpack.c.l.b16 %v206
      %v435 = vunpack.c.l.b16 %v207
      %v436 = vunpack.c.l.b16 %v208
      %v437 = vunpack.c.l.b16 %v209
      %v438 = vunpack.c.l.b16 %v210
      %v439 = vunpack.c.l.b16 %v211
      %v440 = vunpack.c.l.b16 %v212
      %v441 = vunpack.c.l.b16 %v213
      %v442 = vunpack.c.l.b16 %v214
      %v443 = vunpack.c.l.b16 %v215
      %v444 = vunpack.c.l.b16 %v216
      %v445 = vpack.c.b16 %v430, %v429
      %v446 = vpack.c.b16 %v432, %v431
      %v447 = vpack.c.b16 %v434, %v433
      %v448 = vpack.c.b16 %v436, %v435
      %v449 = vpack.c.b16 %v438, %v437
      %v450 = vpack.c.b16 %v440, %v439
      %v451 = vpack.c.b16 %v442, %v441
      %v452 = vpack.c.b16 %v444, %v443
      %v455 = vunpack.c.l.b16 %v217
      %v456 = vunpack.c.l.b16 %v218
      %v457 = vpack.c.b16 %v456, %v455
      %v459 = vsel %vm287, %v445, 0
      %v462 = vsel %vm287, %v446, 0
      %v465 = vsel %vm287, %v447, 0
      %v468 = vsel %vm287, %v448, 0
      %v471 = vsel %vm287, %v449, 0
      %v474 = vsel %vm287, %v450, 0
      %v477 = vsel %vm287, %v451, 0
      %v480 = vsel %vm287, %v452, 0
      %v483 = vsel %vm312, %v457, 0
      %485 = vmatprep.subr.bf16.mxu0 0
      %486 = vmatpush1.bf16.msra.mxu0 0
      %487 = vmatprep.subr.bf16.mxu0 0
      %488 = vmatpush1.bf16.msra.mxu0 0
      %489 = vmatprep.subr.bf16.mxu0 0
      %490 = vmatpush1.bf16.msra.mxu0 0
      %491 = vmatprep.subr.bf16.mxu0 0
      %492 = vmatpush1.bf16.msra.mxu0 0
      %493 = vmatprep.subr.bf16.mxu0 0
      %494 = vmatpush1.bf16.msra.mxu0 0
      %495 = vmatprep.subr.bf16.mxu0 0
      %496 = vmatpush1.bf16.msra.mxu0 0
      %497 = vmatprep.subr.bf16.mxu0 0
      %498 = vmatpush1.bf16.msra.mxu0 0
      %499 = vmatprep.subr.bf16.mxu0 0
      %500 = vmatpush1.bf16.msra.mxu0 %v483
      %501 = vmatprep.subr.bf16.mxu0 0
      %502 = vmatpush2.bf16.msra.mxu0 0
      %503 = vmatprep.subr.bf16.mxu0 0
      %504 = vmatpush2.bf16.msra.mxu0 0
      %505 = vmatprep.subr.bf16.mxu0 0
      %506 = vmatpush2.bf16.msra.mxu0 0
      %507 = vmatprep.subr.bf16.mxu0 0
      %508 = vmatpush2.bf16.msra.mxu0 0
      %509 = vmatprep.subr.bf16.mxu0 0
      %510 = vmatpush2.bf16.msra.mxu0 0
      %511 = vmatprep.subr.bf16.mxu0 0
      %512 = vmatpush2.bf16.msra.mxu0 0
      %513 = vmatprep.subr.bf16.mxu0 0
      %514 = vmatpush2.bf16.msra.mxu0 0
      %515 = vmatprep.subr.bf16.mxu0 0
      %516 = vmatpush2.bf16.msra.mxu0 0
      %517 = vmatprep.mubr.bf16.mxu0 0
      %518 = vmatmul.mubr.bf16.gmra.mxu0 %v459
      %v519 = vpop.f32.mrf.mxu0
      %v520 = vadd.f32 %v351, %v519
      %v521 = vpop.f32.mrf.mxu0
      %v522 = vpop.f32.mrf.mxu0
      %v523 = vadd.f32 %v354, %v522
      %v524 = vpop.f32.mrf.mxu0
      %525 = vmatprep.mubr.bf16.mxu0 0
      %526 = vmatmul.mubr.bf16.gmra.mxu0 %v462
      %v527 = vpop.f32.mrf.mxu0
      %v528 = vadd.f32 %v359, %v527
      %v529 = vpop.f32.mrf.mxu0
      %v530 = vpop.f32.mrf.mxu0
      %v531 = vadd.f32 %v362, %v530
      %v532 = vpop.f32.mrf.mxu0
      %533 = vmatprep.mubr.bf16.mxu0 0
      %534 = vmatmul.mubr.bf16.gmra.mxu0 %v465
      %v535 = vpop.f32.mrf.mxu0
      %v536 = vadd.f32 %v367, %v535
      %v537 = vpop.f32.mrf.mxu0
      %v538 = vpop.f32.mrf.mxu0
      %v539 = vadd.f32 %v370, %v538
      %v540 = vpop.f32.mrf.mxu0
      %541 = vmatprep.mubr.bf16.mxu0 0
      %542 = vmatmul.mubr.bf16.gmra.mxu0 %v468
      %v543 = vpop.f32.mrf.mxu0
      %v544 = vadd.f32 %v375, %v543
      %v545 = vpop.f32.mrf.mxu0
      %v546 = vpop.f32.mrf.mxu0
      %v547 = vadd.f32 %v378, %v546
      %v548 = vpop.f32.mrf.mxu0
      %549 = vmatprep.mubr.bf16.mxu0 0
      %550 = vmatmul.mubr.bf16.gmra.mxu0 %v471
      %v551 = vpop.f32.mrf.mxu0
      %v552 = vadd.f32 %v383, %v551
      %v553 = vpop.f32.mrf.mxu0
      %v554 = vpop.f32.mrf.mxu0
      %v555 = vadd.f32 %v386, %v554
      %v556 = vpop.f32.mrf.mxu0
      %557 = vmatprep.mubr.bf16.mxu0 0
      %558 = vmatmul.mubr.bf16.gmra.mxu0 %v474
      %v559 = vpop.f32.mrf.mxu0
      %v560 = vadd.f32 %v391, %v559
      %v561 = vpop.f32.mrf.mxu0
      %v562 = vpop.f32.mrf.mxu0
      %v563 = vadd.f32 %v394, %v562
      %v564 = vpop.f32.mrf.mxu0
      %565 = vmatprep.mubr.bf16.mxu0 0
      %566 = vmatmul.mubr.bf16.gmra.mxu0 %v477
      %v567 = vpop.f32.mrf.mxu0
      %v568 = vadd.f32 %v399, %v567
      %v569 = vpop.f32.mrf.mxu0
      %v570 = vpop.f32.mrf.mxu0
      %v571 = vadd.f32 %v402, %v570
      %v572 = vpop.f32.mrf.mxu0
      %573 = vmatprep.mubr.bf16.mxu0 0
      %574 = vmatmul.mubr.bf16.gmra.mxu0 %v480
      %v575 = vpop.f32.mrf.mxu0
      %v576 = vadd.f32 %v407, %v575
      %v577 = vpop.f32.mrf.mxu0
      %v578 = vpop.f32.mrf.mxu0
      %v579 = vadd.f32 %v410, %v578
      %v580 = vpop.f32.mrf.mxu0
      %581 = vdwg.mxu0
      %s582 = sadd.s32 %s197, 2
      %s583 = smul.u32 %s582, 2
      %s584 = smul.addr %s583, 4
      %s585 = scalar_lea.vmem %s184, %s584
      %v586 = vld [vmem:[%s585] sm:$0xf]
      %v587 = vld [vmem:[%s585 + $0x4] sm:$0xf]
      %v588 = vld [vmem:[%s585 + $0x8] sm:$0xf]
      %v589 = vld [vmem:[%s585 + $0xc] sm:$0xf]
      %v590 = vld [vmem:[%s585 + $0x10] sm:$0xf]
      %v591 = vld [vmem:[%s585 + $0x14] sm:$0xf]
      %v592 = vld [vmem:[%s585 + $0x18] sm:$0xf]
      %v593 = vld [vmem:[%s585 + $0x1c] sm:$0xf]
      %v594 = vld [vmem:[%s585 + $0x20] sm:$0xf]
      %v595 = vld [vmem:[%s585 + $0x24] sm:$0xf]
      %v596 = vld [vmem:[%s585 + $0x28] sm:$0xf]
      %v597 = vld [vmem:[%s585 + $0x2c] sm:$0xf]
      %v598 = vld [vmem:[%s585 + $0x30] sm:$0xf]
      %v599 = vld [vmem:[%s585 + $0x34] sm:$0xf]
      %v600 = vld [vmem:[%s585 + $0x38] sm:$0xf]
      %v601 = vld [vmem:[%s585 + $0x3c] sm:$0xf]
      %s602 = scalar_lea.vmem %s1, 16
      %v603 = vld [vmem:[%s602] sm:$0xf]
      %v604 = vld [vmem:[%s602 + $0x4] sm:$0x3]
      %v621 = vunpack.c.l.b16 %v586
      %v622 = vunpack.c.l.b16 %v587
      %v623 = vunpack.c.l.b16 %v588
      %v624 = vunpack.c.l.b16 %v589
      %v625 = vunpack.c.l.b16 %v590
      %v626 = vunpack.c.l.b16 %v591
      %v627 = vunpack.c.l.b16 %v592
      %v628 = vunpack.c.l.b16 %v593
      %v629 = vunpack.c.l.b16 %v594
      %v630 = vunpack.c.l.b16 %v595
      %v631 = vunpack.c.l.b16 %v596
      %v632 = vunpack.c.l.b16 %v597
      %v633 = vunpack.c.l.b16 %v598
      %v634 = vunpack.c.l.b16 %v599
      %v635 = vunpack.c.l.b16 %v600
      %v636 = vunpack.c.l.b16 %v601
      %v637 = vpack.c.b16 %v622, %v621
      %v638 = vpack.c.b16 %v624, %v623
      %v639 = vpack.c.b16 %v626, %v625
      %v640 = vpack.c.b16 %v628, %v627
      %v641 = vpack.c.b16 %v630, %v629
      %v642 = vpack.c.b16 %v632, %v631
      %v643 = vpack.c.b16 %v634, %v633
      %v644 = vpack.c.b16 %v636, %v635
      %v647 = vunpack.c.l.b16 %v603
      %v648 = vunpack.c.l.b16 %v604
      %v649 = vpack.c.b16 %v648, %v647
      %v651 = vsel %vm287, %v637, 0
      %v654 = vsel %vm287, %v638, 0
      %v657 = vsel %vm287, %v639, 0
      %v660 = vsel %vm287, %v640, 0
      %v663 = vsel %vm287, %v641, 0
      %v666 = vsel %vm287, %v642, 0
      %v669 = vsel %vm287, %v643, 0
      %v672 = vsel %vm287, %v644, 0
      %v675 = vsel %vm312, %v649, 0
      %677 = vmatprep.subr.bf16.mxu0 0
      %678 = vmatpush1.bf16.msra.mxu0 0
      %679 = vmatprep.subr.bf16.mxu0 0
      %680 = vmatpush1.bf16.msra.mxu0 0
      %681 = vmatprep.subr.bf16.mxu0 0
      %682 = vmatpush1.bf16.msra.mxu0 0
      %683 = vmatprep.subr.bf16.mxu0 0
      %684 = vmatpush1.bf16.msra.mxu0 0
      %685 = vmatprep.subr.bf16.mxu0 0
      %686 = vmatpush1.bf16.msra.mxu0 0
      %687 = vmatprep.subr.bf16.mxu0 0
      %688 = vmatpush1.bf16.msra.mxu0 0
      %689 = vmatprep.subr.bf16.mxu0 0
      %690 = vmatpush1.bf16.msra.mxu0 0
      %691 = vmatprep.subr.bf16.mxu0 0
      %692 = vmatpush1.bf16.msra.mxu0 %v675
      %693 = vmatprep.subr.bf16.mxu0 0
      %694 = vmatpush2.bf16.msra.mxu0 0
      %695 = vmatprep.subr.bf16.mxu0 0
      %696 = vmatpush2.bf16.msra.mxu0 0
      %697 = vmatprep.subr.bf16.mxu0 0
      %698 = vmatpush2.bf16.msra.mxu0 0
      %699 = vmatprep.subr.bf16.mxu0 0
      %700 = vmatpush2.bf16.msra.mxu0 0
      %701 = vmatprep.subr.bf16.mxu0 0
      %702 = vmatpush2.bf16.msra.mxu0 0
      %703 = vmatprep.subr.bf16.mxu0 0
      %704 = vmatpush2.bf16.msra.mxu0 0
      %705 = vmatprep.subr.bf16.mxu0 0
      %706 = vmatpush2.bf16.msra.mxu0 0
      %707 = vmatprep.subr.bf16.mxu0 0
      %708 = vmatpush2.bf16.msra.mxu0 0
      %709 = vmatprep.mubr.bf16.mxu0 0
      %710 = vmatmul.mubr.bf16.gmra.mxu0 %v651
      %v711 = vpop.f32.mrf.mxu0
      %v712 = vadd.f32 0.0, %v711
      %v713 = vpop.f32.mrf.mxu0
      %v714 = vpop.f32.mrf.mxu0
      %v715 = vadd.f32 0.0, %v714
      %v716 = vpop.f32.mrf.mxu0
      %717 = vmatprep.mubr.bf16.mxu0 0
      %718 = vmatmul.mubr.bf16.gmra.mxu0 %v654
      %v719 = vpop.f32.mrf.mxu0
      %v720 = vadd.f32 0.0, %v719
      %v721 = vpop.f32.mrf.mxu0
      %v722 = vpop.f32.mrf.mxu0
      %v723 = vadd.f32 0.0, %v722
      %v724 = vpop.f32.mrf.mxu0
      %725 = vmatprep.mubr.bf16.mxu0 0
      %726 = vmatmul.mubr.bf16.gmra.mxu0 %v657
      %v727 = vpop.f32.mrf.mxu0
      %v728 = vadd.f32 0.0, %v727
      %v729 = vpop.f32.mrf.mxu0
      %v730 = vpop.f32.mrf.mxu0
      %v731 = vadd.f32 0.0, %v730
      %v732 = vpop.f32.mrf.mxu0
      %733 = vmatprep.mubr.bf16.mxu0 0
      %734 = vmatmul.mubr.bf16.gmra.mxu0 %v660
      %v735 = vpop.f32.mrf.mxu0
      %v736 = vadd.f32 0.0, %v735
      %v737 = vpop.f32.mrf.mxu0
      %v738 = vpop.f32.mrf.mxu0
      %v739 = vadd.f32 0.0, %v738
      %v740 = vpop.f32.mrf.mxu0
      %741 = vmatprep.mubr.bf16.mxu0 0
      %742 = vmatmul.mubr.bf16.gmra.mxu0 %v663
      %v743 = vpop.f32.mrf.mxu0
      %v744 = vadd.f32 0.0, %v743
      %v745 = vpop.f32.mrf.mxu0
      %v746 = vpop.f32.mrf.mxu0
      %v747 = vadd.f32 0.0, %v746
      %v748 = vpop.f32.mrf.mxu0
      %749 = vmatprep.mubr.bf16.mxu0 0
      %750 = vmatmul.mubr.bf16.gmra.mxu0 %v666
      %v751 = vpop.f32.mrf.mxu0
      %v752 = vadd.f32 0.0, %v751
      %v753 = vpop.f32.mrf.mxu0
      %v754 = vpop.f32.mrf.mxu0
      %v755 = vadd.f32 0.0, %v754
      %v756 = vpop.f32.mrf.mxu0
      %757 = vmatprep.mubr.bf16.mxu0 0
      %758 = vmatmul.mubr.bf16.gmra.mxu0 %v669
      %v759 = vpop.f32.mrf.mxu0
      %v760 = vadd.f32 0.0, %v759
      %v761 = vpop.f32.mrf.mxu0
      %v762 = vpop.f32.mrf.mxu0
      %v763 = vadd.f32 0.0, %v762
      %v764 = vpop.f32.mrf.mxu0
      %765 = vmatprep.mubr.bf16.mxu0 0
      %766 = vmatmul.mubr.bf16.gmra.mxu0 %v672
      %v767 = vpop.f32.mrf.mxu0
      %v768 = vadd.f32 0.0, %v767
      %v769 = vpop.f32.mrf.mxu0
      %v770 = vpop.f32.mrf.mxu0
      %v771 = vadd.f32 0.0, %v770
      %v772 = vpop.f32.mrf.mxu0
      %773 = vdwg.mxu0
      %v774 = vadd.f32 %v520, %v712
      %v775 = vadd.f32 %v523, %v715
      %v776 = vadd.f32 %v528, %v720
      %v777 = vadd.f32 %v531, %v723
      %v778 = vadd.f32 %v536, %v728
      %v779 = vadd.f32 %v539, %v731
      %v780 = vadd.f32 %v544, %v736
      %v781 = vadd.f32 %v547, %v739
      %v782 = vadd.f32 %v552, %v744
      %v783 = vadd.f32 %v555, %v747
      %v784 = vadd.f32 %v560, %v752
      %v785 = vadd.f32 %v563, %v755
      %v786 = vadd.f32 %v568, %v760
      %v787 = vadd.f32 %v571, %v763
      %v788 = vadd.f32 %v576, %v768
      %v789 = vadd.f32 %v579, %v771
      %v790 = vld [vmem:[%s2] sm:$0x1]
      %v792 = vlaneseq
      %v793 = vshrl.u32 %v792, 7
      %v794 = vsub.s32 0, %v793
      %v795 = vrot.slane %v790, %v794
      %v797 = vadd.f32 %v774, %v795
      %v798 = vadd.f32 %v775, %v795
      %v799 = vadd.f32 %v776, %v795
      %v800 = vadd.f32 %v777, %v795
      %v801 = vadd.f32 %v778, %v795
      %v802 = vadd.f32 %v779, %v795
      %v803 = vadd.f32 %v780, %v795
      %v804 = vadd.f32 %v781, %v795
      %v805 = vadd.f32 %v782, %v795
      %v806 = vadd.f32 %v783, %v795
      %v807 = vadd.f32 %v784, %v795
      %v808 = vadd.f32 %v785, %v795
      %v809 = vadd.f32 %v786, %v795
      %v810 = vadd.f32 %v787, %v795
      %v811 = vadd.f32 %v788, %v795
      %v812 = vadd.f32 %v789, %v795
      %v813 = vmax.f32 %v797, 0.0
      %v814 = vmax.f32 %v798, 0.0
      %v815 = vmax.f32 %v799, 0.0
      %v816 = vmax.f32 %v800, 0.0
      %v817 = vmax.f32 %v801, 0.0
      %v818 = vmax.f32 %v802, 0.0
      %v819 = vmax.f32 %v803, 0.0
      %v820 = vmax.f32 %v804, 0.0
      %v821 = vmax.f32 %v805, 0.0
      %v822 = vmax.f32 %v806, 0.0
      %v823 = vmax.f32 %v807, 0.0
      %v824 = vmax.f32 %v808, 0.0
      %v825 = vmax.f32 %v809, 0.0
      %v826 = vmax.f32 %v810, 0.0
      %v827 = vmax.f32 %v811, 0.0
      %v828 = vmax.f32 %v812, 0.0
      %829 = vst [vmem:[%s194] sm:$0xff] %v813
      %830 = vst [vmem:[%s194 + $0x8] sm:$0xff] %v814
      %831 = vst [vmem:[%s194 + $0x10] sm:$0xff] %v815
      %832 = vst [vmem:[%s194 + $0x18] sm:$0xff] %v816
      %833 = vst [vmem:[%s194 + $0x20] sm:$0xff] %v817
      %834 = vst [vmem:[%s194 + $0x28] sm:$0xff] %v818
      %835 = vst [vmem:[%s194 + $0x30] sm:$0xff] %v819
      %836 = vst [vmem:[%s194 + $0x38] sm:$0xff] %v820
      %837 = vst [vmem:[%s194 + $0x40] sm:$0xff] %v821
      %838 = vst [vmem:[%s194 + $0x48] sm:$0xff] %v822
      %839 = vst [vmem:[%s194 + $0x50] sm:$0xff] %v823
      %840 = vst [vmem:[%s194 + $0x58] sm:$0xff] %v824
      %841 = vst [vmem:[%s194 + $0x60] sm:$0xff] %v825
      %842 = vst [vmem:[%s194 + $0x68] sm:$0xff] %v826
      %843 = vst [vmem:[%s194 + $0x70] sm:$0xff] %v827
      %844 = vst [vmem:[%s194 + $0x78] sm:$0xff] %v828
      %s845 = smul.u32 8, %s19
      %p846 = scmp.lt.s32.totalorder %s18, 1
      %s847 = scalar_select %p846, %s18, 1
      %p848 = scmp.lt.s32.totalorder %s845, 15
      %s849 = scalar_select %p848, %s845, 15
      %s850 = smul.addr %s849, 2
      %s851 = smul.addr %s847, 32
      %s852 = sadd.s32 %s850, %s851
      %s853 = smul.addr %s852, 8
      %s854 = scalar_lea.vmem %s3, %s853
      // Predicated region
      $region33: #{conv_bn_act.1} parent=31 // pred_check
        %p855 = pneg %p114
      $region34: #{conv_bn_act.1} parent=31 // pred_check_branch
        %857 = sbr.rel (%p855) target = $region36
      $region35: #{conv_bn_act.1} parent=31 // pred_region
        %s858 = smul.u32 8, %s19
      $region36: #{conv_bn_act.1} parent=31 // pred_fallthru
        _
    $region32: #{conv_bn_act.1} parent=5 // pred_fallthru
      _
    %p859 = scmp.le.s32.totalorder 2, %s9
    // Predicated region
    $region37: #{conv_bn_act.1} parent=5 // pred_check
      %p860 = pneg %p859
    $region38: #{conv_bn_act.1} parent=5 // pred_check_branch
      %862 = sbr.rel (%p860) target = $region40
    $region39: #{conv_bn_act.1} parent=5 // pred_region
      %s863 = ssub.s32 %s9, 2
      // Predicated region
      $region41: #{conv_bn_act.1} parent=39 // pred_check
        %p864 = pneg %p120
      $region42: #{conv_bn_act.1} parent=39 // pred_check_branch
        %866 = sbr.rel (%p864) target = $region44
      $region43: #{conv_bn_act.1} parent=39 // pred_region
        %s867 = smul.u32 8, %s21
        %p868 = scmp.lt.s32.totalorder %s20, 1
        %s869 = scalar_select %p868, %s20, 1
        %p870 = scmp.lt.s32.totalorder %s867, 15
        %s871 = scalar_select %p870, %s867, 15
        %s872 = smul.addr %s871, 2
        %s873 = smul.addr %s869, 32
        %s874 = sadd.s32 %s872, %s873
        %s875 = smul.addr %s874, 8
        %s876 = scalar_lea.vmem %s3, %s875
      $region44: #{conv_bn_act.1} parent=39 // pred_fallthru
        _
    $region40: #{conv_bn_act.1} parent=5 // pred_fallthru
      _
  $region6: #{conv_bn_act.1} parent=0 // loop_footer
    %s13 = sadd.s32 1, %s9
  $region7: #{conv_bn_act.1} parent=0 // loop_footer_branch
    %8 = sbr.rel target = $region3
  $region8: #{conv_bn_act.1} parent=0 // loop_exit
    _

</llo_original>
